<compile_context>
chip_gen: v7x
topology: tpu7x:2x2x1
jax: 0.10.0
libtpu: 0.0.40
codegen_flags: <defaults>
</compile_context>

<pallas_src>
import functools

import jax
import jax.numpy as jnp
from jax import lax
from jax.experimental import pallas as pl
from jax.experimental.pallas import tpu as pltpu

EPS = 1e-12


def layernorm_kernel(x_ref, p_ref, o_ref, *, inv_h: float, eps: float):
    # x_ref: (tm, Hp) tile of rows (hidden padded to Hp with zeros).
    # p_ref: (2, Hp) resident [gamma; beta], zero on padded lanes.
    y = x_ref[...].astype(jnp.float32)

    # Single-pass statistics: padded lanes are zero, so they contribute nothing to
    # either sum; divide by the TRUE hidden size via inv_h.
    sum_y = jnp.sum(y, axis=-1, keepdims=True)
    sum_y2 = jnp.sum(y * y, axis=-1, keepdims=True)
    u = sum_y * inv_h
    var = jnp.maximum(sum_y2 * inv_h - u * u, 0.0)

    # rsqrt goes to the (otherwise idle) EUP slot; avoids a VALU divide.
    y_hat = (y - u) * lax.rsqrt(var + eps)

    p = p_ref[...]
    gamma = p[0:1, :]
    beta = p[1:2, :]
    # gamma/beta are zero on padded lanes -> padded output lanes are exactly 0.
    o_ref[...] = (gamma * y_hat + beta).astype(o_ref.dtype)


def layer_norm(x, gamma, beta, *, eps=EPS, tm=256):
    """TF-style LayerNorm over the last axis of x (epsilon inside the sqrt)."""
    orig_shape = x.shape
    H = orig_shape[-1]
    x2d = x.reshape(-1, H)
    M = x2d.shape[0]

    # Lane-dense hidden axis: pad to a multiple of 128.
    Hp = pl.cdiv(H, 128) * 128
    # Token tile: multiple of 8 sublanes (f32), clamped to the (row-padded) M.
    tm = max(8, (min(tm, pl.cdiv(M, 8) * 8) // 8) * 8)
    Mp = pl.cdiv(M, tm) * tm

    x_pad = jnp.zeros((Mp, Hp), x.dtype).at[:M, :H].set(x2d)
    params = (
        jnp.zeros((2, Hp), jnp.float32)
        .at[0, :H].set(gamma.astype(jnp.float32))
        .at[1, :H].set(beta.astype(jnp.float32))
    )

    kernel = functools.partial(layernorm_kernel, inv_h=1.0 / H, eps=eps)

    cost = pl.CostEstimate(
        flops=8 * Mp * Hp,
        transcendentals=Mp,                                  # one rsqrt per row
        bytes_accessed=2 * Mp * Hp * x.dtype.itemsize + 2 * Hp * 4,
    )

    out_pad = pl.pallas_call(
        kernel,
        out_shape=jax.ShapeDtypeStruct((Mp, Hp), x.dtype),
        grid_spec=pltpu.PrefetchScalarGridSpec(
            num_scalar_prefetch=0,
            grid=(Mp // tm,),
            in_specs=[
                pl.BlockSpec((tm, Hp), lambda i: (i, 0)),    # x row tile
                pl.BlockSpec((2, Hp), lambda i: (0, 0)),     # [gamma; beta] resident
            ],
            out_specs=pl.BlockSpec((tm, Hp), lambda i: (i, 0)),
        ),
        compiler_params=pltpu.CompilerParams(
            dimension_semantics=("parallel",),               # megacore split (v7x)
            vmem_limit_bytes=64 * 1024 * 1024,
        ),
        cost_estimate=cost,
    )(x_pad, params)

    return out_pad[:M, :H].reshape(orig_shape)


def reference(x, gamma, beta, eps=EPS):
    u = x.mean(-1, keepdims=True)
    s = ((x - u) ** 2).mean(-1, keepdims=True)
    return gamma * ((x - u) / jnp.sqrt(s + eps)) + beta


if __name__ == "__main__":
    B, L, H = 2, 8, 32  # batch, seq, hidden_size

    key = jax.random.PRNGKey(0)
    kx, kg, kb = jax.random.split(key, 3)

    x = jax.random.normal(kx, (B, L, H), dtype=jnp.float32)
    # Module init is ones/zeros; use non-trivial affine params to exercise the path.
    gamma = 1.0 + 0.1 * jax.random.normal(kg, (H,), dtype=jnp.float32)
    beta = 0.1 * jax.random.normal(kb, (H,), dtype=jnp.float32)

    out = layer_norm(x, gamma, beta)
    out = jax.block_until_ready(out)

    ref = reference(x, gamma, beta)
    assert out.shape == x.shape
    assert jnp.allclose(out, ref, atol=1e-5, rtol=1e-5), "mismatch vs reference"

    print("KERNEL_OK")
</pallas_src>

<mosaic_0001>
module attributes {stable_mosaic.version = 11 : i64} {
  func.func @layernorm_kernel(%arg0: i32, %arg1: memref<16x128xf32, #tpu.memory_space<vmem>>, %arg2: memref<2x128xf32, #tpu.memory_space<vmem>>, %arg3: memref<16x128xf32, #tpu.memory_space<vmem>>) attributes {dimension_semantics = [#tpu.dimension_semantics<parallel>], iteration_bounds = array<i64: 1>, scalar_prefetch = 0 : i64, scratch_operands = 0 : i64, tpu.core_type = #tpu.core_type<tc>, window_params = [{transform_indices = @transform_0, window_bounds = array<i64: 16, 128>}, {pipeline_mode = #tpu.pipeline_mode<synchronous>, transform_indices = @transform_1, window_bounds = array<i64: 2, 128>}, {transform_indices = @transform_2, window_bounds = array<i64: 16, 128>}]} {
    %c0 = arith.constant 0 : index
    %c0_0 = arith.constant 0 : index
    %0 = vector.load %arg1[%c0, %c0_0] : memref<16x128xf32, #tpu.memory_space<vmem>>, vector<16x128xf32>
    %cst = arith.constant dense<0.000000e+00> : vector<16xf32>
    %1 = vector.multi_reduction <add>, %0, %cst [1] : vector<16x128xf32> to vector<16xf32>
    %2 = vector.shape_cast %1 : vector<16xf32> to vector<16x1xf32>
    %3 = arith.mulf %0, %0 : vector<16x128xf32>
    %cst_1 = arith.constant dense<0.000000e+00> : vector<16xf32>
    %4 = vector.multi_reduction <add>, %3, %cst_1 [1] : vector<16x128xf32> to vector<16xf32>
    %5 = vector.shape_cast %4 : vector<16xf32> to vector<16x1xf32>
    %cst_2 = arith.constant 3.125000e-02 : f32
    %6 = vector.broadcast %cst_2 : f32 to vector<16x1xf32>
    %7 = arith.mulf %2, %6 : vector<16x1xf32>
    %cst_3 = arith.constant 3.125000e-02 : f32
    %8 = vector.broadcast %cst_3 : f32 to vector<16x1xf32>
    %9 = arith.mulf %5, %8 : vector<16x1xf32>
    %10 = arith.mulf %7, %7 : vector<16x1xf32>
    %11 = arith.subf %9, %10 : vector<16x1xf32>
    %cst_4 = arith.constant 0.000000e+00 : f32
    %12 = vector.broadcast %cst_4 : f32 to vector<16x1xf32>
    %13 = arith.maximumf %11, %12 : vector<16x1xf32>
    %14 = vector.broadcast %7 : vector<16x1xf32> to vector<16x128xf32>
    %15 = arith.subf %0, %14 : vector<16x128xf32>
    %cst_5 = arith.constant 9.99999996E-13 : f32
    %16 = vector.broadcast %cst_5 : f32 to vector<16x1xf32>
    %17 = arith.addf %13, %16 : vector<16x1xf32>
    %18 = math.rsqrt %17 : vector<16x1xf32>
    %19 = vector.broadcast %18 : vector<16x1xf32> to vector<16x128xf32>
    %20 = arith.mulf %15, %19 : vector<16x128xf32>
    %c0_6 = arith.constant 0 : index
    %c0_7 = arith.constant 0 : index
    %21 = vector.load %arg2[%c0_6, %c0_7] : memref<2x128xf32, #tpu.memory_space<vmem>>, vector<2x128xf32>
    %22 = vector.extract_strided_slice %21 {offsets = [0, 0], sizes = [1, 128], strides = [1, 1]} : vector<2x128xf32> to vector<1x128xf32>
    %23 = vector.extract_strided_slice %21 {offsets = [1, 0], sizes = [1, 128], strides = [1, 1]} : vector<2x128xf32> to vector<1x128xf32>
    %24 = vector.broadcast %22 : vector<1x128xf32> to vector<16x128xf32>
    %25 = arith.mulf %24, %20 : vector<16x128xf32>
    %26 = vector.broadcast %23 : vector<1x128xf32> to vector<16x128xf32>
    %27 = arith.addf %25, %26 : vector<16x128xf32>
    %c0_8 = arith.constant 0 : index
    %c0_9 = arith.constant 0 : index
    %28 = vector.load %arg3[%c0_8, %c0_9] : memref<16x128xf32, #tpu.memory_space<vmem>>, vector<16x128xf32>
    tpu.vector_store %arg3[%c0_8, %c0_9], %27 {strides = array<i32>} : memref<16x128xf32, #tpu.memory_space<vmem>>, vector<16x128xf32>,
    return
  }
  func.func @transform_0(%arg0: i32) -> (i32, i32) {
    %c0_i32 = arith.constant 0 : i32
    %c0_i32_0 = arith.constant 0 : i32
    return %arg0, %c0_i32 : i32, i32
  }
  func.func @transform_1(%arg0: i32) -> (i32, i32) {
    %c0_i32 = arith.constant 0 : i32
    %c0_i32_0 = arith.constant 0 : i32
    %c0_i32_1 = arith.constant 0 : i32
    return %c0_i32, %c0_i32_0 : i32, i32
  }
  func.func @transform_2(%arg0: i32) -> (i32, i32) {
    %c0_i32 = arith.constant 0 : i32
    %c0_i32_0 = arith.constant 0 : i32
    return %arg0, %c0_i32 : i32, i32
  }
}

</mosaic_0001>

<llo_original>
// kernel: tpu_custom_call.1
$region0: #{tpu_custom_call.1}
  #allocation0 [shape = 'u32[]', space=smem, size = 0x4, offset = 0x4, fixed_abs, tag = 'smem constant byte address 0x4 - core index']
  #allocation1 [shape = 'u32[144,128]{1,0:T(1,128)}', space=vmem, size = 0x12000, scoped, tag = 'internal scratch']
  %s0 = inlined_call_operand.hbm [shape: f32[16,128], index: 0, kind: input, shape index: {}]
  %s1 = inlined_call_operand.hbm [shape: f32[2,128], index: 1, kind: input, shape index: {}]
  %s2 = inlined_call_operand.hbm [shape: f32[16,128], index: 2, kind: output, shape index: {}]
  %s3 = sld [smem:[#allocation0]]
  $region26: #{tpu_custom_call.1} parent=0
    _
  %s5 = ssub.s32 1, %s3
  %s6 = scalar_select 0, %s5, %s3
  $region1: #{tpu_custom_call.1} parent=0
    #allocation2 [shape = 'u8[8192]{0}', space=vmem, size = 0x2000, scoped, tag = 'input window, operand 0, single buffered']
    #allocation3 [shape = 's32[1]{0}', space=sflag, size = 0x4, scoped, tag = 'scoped memory for tpu_custom_call.1']
    #allocation4 [shape = 's32[1]{0}', space=sflag, size = 0x4, scoped, tag = 'scoped memory for tpu_custom_call.1']
    #allocation5 [shape = 'u8[1024]{0}', space=vmem, size = 0x400, scoped, tag = 'input window, operand 1, single buffered']
    #allocation6 [shape = 's32[1]{0}', space=sflag, size = 0x4, scoped, tag = 'scoped memory for tpu_custom_call.1']
    #allocation7 [shape = 'u8[8192]{0}', space=vmem, size = 0x2000, scoped, tag = 'output window, operand 0, single buffered']
    %7 = vsyncpa [#allocation3], 0
    %8 = vsyncpa [#allocation6], 0
    %9 = vsyncpa [#allocation4], 0
    // Predicated region
    $region2: #{tpu_custom_call.1} parent=1 // pred_check
      _
    $region3: #{tpu_custom_call.1} parent=1 // pred_check_branch
      %11 = sbr.rel (0) target = $region5
    $region4: #{tpu_custom_call.1} parent=1 // pred_region
      %s13 = ssub.s32 256, 256
      %14 = vsyncadd [#allocation3], %s13
      %s15 = sshll.u32 [#allocation2], 4
      %s16 = int_to_ptr.vmem [resolvable:$true] %s15
      %21 = dma.hbm_to_vmem [thread:$0]  %s0, 256, %s16, [#allocation3], 128, 128, 8
    $region5: #{tpu_custom_call.1} parent=1 // pred_fallthru
      _
    // Predicated region
    $region6: #{tpu_custom_call.1} parent=1 // pred_check
      _
    $region7: #{tpu_custom_call.1} parent=1 // pred_check_branch
      %23 = sbr.rel (0) target = $region9
    $region8: #{tpu_custom_call.1} parent=1 // pred_region
      %s25 = ssub.s32 32, 32
      %26 = vsyncadd [#allocation6], %s25
      %s28 = sshll.u32 [#allocation5], 4
      %s29 = int_to_ptr.vmem [resolvable:$true] %s28
      %31 = dma.hbm_to_vmem [thread:$0]  %s1, 32, %s29, [#allocation6]
    $region9: #{tpu_custom_call.1} parent=1 // pred_fallthru
      _
    // Predicated region
    $region10: #{tpu_custom_call.1} parent=1 // pred_check
      _
    $region11: #{tpu_custom_call.1} parent=1 // pred_check_branch
      %33 = sbr.rel (0) target = $region13
    $region12: #{tpu_custom_call.1} parent=1 // pred_region
      %34 = dma.done [#allocation3], 256
    $region13: #{tpu_custom_call.1} parent=1 // pred_fallthru
      _
    // Predicated region
    $region14: #{tpu_custom_call.1} parent=1 // pred_check
      _
    $region15: #{tpu_custom_call.1} parent=1 // pred_check_branch
      %36 = sbr.rel (0) target = $region17
    $region16: #{tpu_custom_call.1} parent=1 // pred_region
      %37 = dma.done [#allocation6], 32
    $region17: #{tpu_custom_call.1} parent=1 // pred_fallthru
      _
    %v38 = vld [vmem:[#allocation2] sm:$0xff]
    %v39 = vld [vmem:[#allocation2 + $0x8] sm:$0xff]
    %40 = vadd.xlane.f32.xlu0 %v38
    %v41 = vpop.xlane.xlu0 %40
    %42 = vadd.xlane.f32.xlu0 %v39
    %v43 = vpop.xlane.xlu0 %42
    %v44 = vmul.f32 %v38, %v38
    %v45 = vmul.f32 %v39, %v39
    %46 = vadd.xlane.f32.xlu0 %v44
    %v47 = vpop.xlane.xlu0 %46
    %48 = vadd.xlane.f32.xlu0 %v45
    %v49 = vpop.xlane.xlu0 %48
    %v50 = vmul.f32 %v41, 0.03125
    %v51 = vmul.f32 %v43, 0.03125
    %v52 = vmul.f32 %v47, 0.03125
    %v53 = vmul.f32 %v49, 0.03125
    %v54 = vmul.f32 %v50, %v50
    %v55 = vmul.f32 %v51, %v51
    %v56 = vsub.f32 %v52, %v54
    %v57 = vsub.f32 %v53, %v55
    %v58 = vmax.f32 %v56, 0.0
    %v59 = vmax.f32 %v57, 0.0
    %v60 = vsub.f32 %v38, %v50
    %v61 = vsub.f32 %v39, %v51
    %v62 = vadd.f32 %v58, 1e-12
    %v63 = vadd.f32 %v59, 1e-12
    %v64 = vrsqrt.pop %v62
    %v65 = vrsqrt.pop %v63
    %v66 = vmul.f32 %v60, %v64
    %v67 = vmul.f32 %v61, %v65
    %v68 = vld [vmem:[#allocation5] sm:$0x3]
    %v69 = vlaneseq
    %v70 = vshrl.u32 %v69, 7
    %v71 = vsub.s32 0, %v70
    %v72 = vrot.slane %v68, %v71
    %v73 = vmul.f32 %v72, %v66
    %v74 = vmul.f32 %v72, %v67
    %v75 = vlaneseq
    %v76 = vshrl.u32 %v75, 7
    %v77 = vsub.s32 1, %v76
    %v78 = vrot.slane %v68, %v77
    %v79 = vadd.f32 %v73, %v78
    %v80 = vadd.f32 %v74, %v78
    %81 = vst [vmem:[#allocation7] sm:$0xff] %v79
    %82 = vst [vmem:[#allocation7 + $0x8] sm:$0xff] %v80
    // Predicated region
    $region18: #{tpu_custom_call.1} parent=1 // pred_check
      _
    $region19: #{tpu_custom_call.1} parent=1 // pred_check_branch
      %84 = sbr.rel (0) target = $region21
    $region20: #{tpu_custom_call.1} parent=1 // pred_region
      %s86 = ssub.s32 256, 256
      %87 = vsyncadd [#allocation4], %s86
      %s88 = sshll.u32 [#allocation7], 4
      %s89 = int_to_ptr.vmem [resolvable:$true] %s88
      %94 = dma.vmem_to_hbm [thread:$0]  %s89, 256, %s2, [#allocation4], 128, 128, 8
    $region21: #{tpu_custom_call.1} parent=1 // pred_fallthru
      _
    // Predicated region
    $region22: #{tpu_custom_call.1} parent=1 // pred_check
      _
    $region23: #{tpu_custom_call.1} parent=1 // pred_check_branch
      %96 = sbr.rel (0) target = $region25
    $region24: #{tpu_custom_call.1} parent=1 // pred_region
      %97 = dma.done [#allocation4], 256
    $region25: #{tpu_custom_call.1} parent=1 // pred_fallthru
      _
    %98 = vsyncpa [#allocation3], 1
    %99 = vsyncpa [#allocation6], 1
    %100 = vsyncpa [#allocation4], 1

</llo_original>
